<compile_context>
chip_gen: v6e
topology: v6e:2x2x1
jax: 0.10.0
libtpu: 0.0.40
codegen_flags: <defaults>
</compile_context>

<pallas_src>
import jax
import jax.numpy as jnp
from jax.experimental import pallas as pl
from jax.experimental.pallas import tpu as pltpu

TILE_B_MAX = 2048  # mem-bound kernel: biggest tile that comfortably fits VMEM


def _round_up(x, m):
    return (x + m - 1) // m * m


def _cdiv(a, b):
    return (a + b - 1) // b


def _choose_tile(b):
    """Pick (tile_b, b_pad) minimizing padding, >=2 grid steps when possible."""
    b8 = _round_up(b, 8)                     # sublane alignment for f32 input
    n_tiles = _cdiv(b8, TILE_B_MAX)
    # v7x megacore: make sure the parallel batch axis has >= 2 steps whenever
    # there is enough work for two tiles of at least 16 rows each.
    if n_tiles < 2 and b8 >= 32:
        n_tiles = 2
    tile_b = _round_up(_cdiv(b8, n_tiles), 8)
    b_pad = _round_up(b8, tile_b)
    return tile_b, b_pad


def mlp_kernel(x_ref, w1_ref, b1_ref, w2_ref, b2_ref, w3_ref, b3_ref,
               w4_ref, b4_ref, o_ref):
    # Cast activations to bf16 on the VMEM tile (no-op if already bf16);
    # accumulate every matmul in f32 on the MXU.
    h = x_ref[...].astype(jnp.bfloat16)
    h = jnp.maximum(
        jnp.dot(h, w1_ref[...], preferred_element_type=jnp.float32)
        + b1_ref[...], 0.0)
    h = jnp.maximum(
        jnp.dot(h.astype(jnp.bfloat16), w2_ref[...],
                preferred_element_type=jnp.float32) + b2_ref[...], 0.0)
    h = jnp.maximum(
        jnp.dot(h.astype(jnp.bfloat16), w3_ref[...],
                preferred_element_type=jnp.float32) + b3_ref[...], 0.0)
    # NOTE: the PyTorch spec applies ReLU to the 4th linear as well.
    h = jnp.maximum(
        jnp.dot(h.astype(jnp.bfloat16), w4_ref[...],
                preferred_element_type=jnp.float32) + b4_ref[...], 0.0)
    # Numerically-stable softmax; exact divide (kernel is HBM-bound, so the
    # extra EUP/VPU cycles vs. the approximate reciprocal are hidden).
    m = jnp.max(h, axis=-1, keepdims=True)
    e = jnp.exp(h - m)
    denom = jnp.sum(e, axis=-1, keepdims=True)
    o_ref[...] = (e / denom).astype(o_ref.dtype)


@jax.jit
def mlp_forward(x, w1, b1, w2, b2, w3, b3, w4, b4):
    B = x.shape[0]
    x2 = x.reshape(B, -1)                    # flatten(start_dim=1); pure reshape
    in_dim = x2.shape[1]
    out_dim = w4.shape[1]

    # Batch tiling chosen to avoid / minimize the jnp.pad HBM copy.
    tile_b, b_pad = _choose_tile(B)
    if b_pad != B:
        x2 = jnp.pad(x2, ((0, b_pad - B), (0, 0)))
    grid = (b_pad // tile_b,)

    # Weights in bf16 (halves weight DMA bytes, bf16-native MXU); biases f32.
    w1b = w1.astype(jnp.bfloat16)
    w2b = w2.astype(jnp.bfloat16)
    w3b = w3.astype(jnp.bfloat16)
    w4b = w4.astype(jnp.bfloat16)

    h1, h2, h3 = w1.shape[1], w2.shape[1], w3.shape[1]
    in_bytes = 2 if x2.dtype == jnp.bfloat16 else 4
    flops = 2 * b_pad * (in_dim * h1 + h1 * h2 + h2 * h3 + h3 * out_dim)
    bytes_accessed = (
        b_pad * in_dim * in_bytes + b_pad * out_dim * 4          # input + output
        + 2 * (in_dim * h1 + h1 * h2 + h2 * h3 + h3 * out_dim)   # bf16 weights
        + 4 * (h1 + h2 + h3 + out_dim))                          # f32 biases
    cost = pl.CostEstimate(flops=flops,
                           transcendentals=b_pad * out_dim,
                           bytes_accessed=bytes_accessed)

    const = lambda i: (0, 0)                 # weights/biases stay VMEM-resident
    out = pl.pallas_call(
        mlp_kernel,
        out_shape=jax.ShapeDtypeStruct((b_pad, out_dim), jnp.float32),
        grid_spec=pltpu.PrefetchScalarGridSpec(
            num_scalar_prefetch=0,
            grid=grid,
            in_specs=[
                pl.BlockSpec((tile_b, in_dim), lambda i: (i, 0)),
                pl.BlockSpec((in_dim, h1), const),
                pl.BlockSpec((1, h1), const),
                pl.BlockSpec((h1, h2), const),
                pl.BlockSpec((1, h2), const),
                pl.BlockSpec((h2, h3), const),
                pl.BlockSpec((1, h3), const),
                pl.BlockSpec((h3, out_dim), const),
                pl.BlockSpec((1, out_dim), const),
            ],
            out_specs=pl.BlockSpec((tile_b, out_dim), lambda i: (i, 0)),
        ),
        compiler_params=pltpu.CompilerParams(
            dimension_semantics=("parallel",)),
        cost_estimate=cost,
    )(x2, w1b, b1, w2b, b2, w3b, b3, w4b, b4)
    return out[:B]


def init_linear(key, fan_in, fan_out):
    # PyTorch nn.Linear default init: U(-1/sqrt(fan_in), 1/sqrt(fan_in))
    kw, kb = jax.random.split(key)
    bound = 1.0 / jnp.sqrt(jnp.float32(fan_in))
    w = jax.random.uniform(kw, (fan_in, fan_out), jnp.float32, -bound, bound)
    b = jax.random.uniform(kb, (1, fan_out), jnp.float32, -bound, bound)
    return w, b


def mlp_ref(x, w1, b1, w2, b2, w3, b3, w4, b4):
    h = x.reshape(x.shape[0], -1)
    h = jnp.maximum(h @ w1 + b1, 0.0)
    h = jnp.maximum(h @ w2 + b2, 0.0)
    h = jnp.maximum(h @ w3 + b3, 0.0)
    h = jnp.maximum(h @ w4 + b4, 0.0)
    return jax.nn.softmax(h, axis=-1)


if __name__ == "__main__":
    # MLP(neurons=[256, 128, 128, 128, 128]); input (B, 1, 16, 16) -> flatten -> 256
    neurons = [256, 128, 128, 128, 128]
    key = jax.random.PRNGKey(0)
    kx, k1, k2, k3, k4 = jax.random.split(key, 5)

    B = 8
    x = jax.random.normal(kx, (B, 1, 16, 16), jnp.float32)

    w1, b1 = init_linear(k1, neurons[0], neurons[1])
    w2, b2 = init_linear(k2, neurons[1], neurons[2])
    w3, b3 = init_linear(k3, neurons[2], neurons[3])
    w4, b4 = init_linear(k4, neurons[3], neurons[4])

    out = mlp_forward(x, w1, b1, w2, b2, w3, b3, w4, b4)
    out = jax.block_until_ready(out)

    assert out.shape == (B, neurons[4])
    # Exact-divide softmax: rows sum to 1 within f32 accumulation error.
    assert jnp.allclose(jnp.sum(out, axis=-1), 1.0, atol=1e-4)
    # bf16 matmuls vs f32 reference: atol 2e-2 covers the precision trade-off.
    ref = mlp_ref(x, w1, b1, w2, b2, w3, b3, w4, b4)
    assert jnp.allclose(out, ref, atol=2e-2), float(jnp.max(jnp.abs(out - ref)))

    print("KERNEL_OK")
</pallas_src>

<mosaic_0001>
module attributes {stable_mosaic.version = 11 : i64} {
  func.func @mlp_kernel(%arg0: i32, %arg1: memref<8x256xf32, #tpu.memory_space<vmem>>, %arg2: memref<256x128xbf16, #tpu.memory_space<vmem>>, %arg3: memref<1x128xf32, #tpu.memory_space<vmem>>, %arg4: memref<128x128xbf16, #tpu.memory_space<vmem>>, %arg5: memref<1x128xf32, #tpu.memory_space<vmem>>, %arg6: memref<128x128xbf16, #tpu.memory_space<vmem>>, %arg7: memref<1x128xf32, #tpu.memory_space<vmem>>, %arg8: memref<128x128xbf16, #tpu.memory_space<vmem>>, %arg9: memref<1x128xf32, #tpu.memory_space<vmem>>, %arg10: memref<8x128xf32, #tpu.memory_space<vmem>>) attributes {dimension_semantics = [#tpu.dimension_semantics<parallel>], iteration_bounds = array<i64: 1>, scalar_prefetch = 0 : i64, scratch_operands = 0 : i64, tpu.core_type = #tpu.core_type<tc>, window_params = [{transform_indices = @transform_0, window_bounds = array<i64: 8, 256>}, {pipeline_mode = #tpu.pipeline_mode<synchronous>, transform_indices = @transform_1, window_bounds = array<i64: 256, 128>}, {pipeline_mode = #tpu.pipeline_mode<synchronous>, transform_indices = @transform_2, window_bounds = array<i64: 1, 128>}, {pipeline_mode = #tpu.pipeline_mode<synchronous>, transform_indices = @transform_3, window_bounds = array<i64: 128, 128>}, {pipeline_mode = #tpu.pipeline_mode<synchronous>, transform_indices = @transform_4, window_bounds = array<i64: 1, 128>}, {pipeline_mode = #tpu.pipeline_mode<synchronous>, transform_indices = @transform_5, window_bounds = array<i64: 128, 128>}, {pipeline_mode = #tpu.pipeline_mode<synchronous>, transform_indices = @transform_6, window_bounds = array<i64: 1, 128>}, {pipeline_mode = #tpu.pipeline_mode<synchronous>, transform_indices = @transform_7, window_bounds = array<i64: 128, 128>}, {pipeline_mode = #tpu.pipeline_mode<synchronous>, transform_indices = @transform_8, window_bounds = array<i64: 1, 128>}, {transform_indices = @transform_9, window_bounds = array<i64: 8, 128>}]} {
    %c0 = arith.constant 0 : index
    %c0_0 = arith.constant 0 : index
    %0 = vector.load %arg1[%c0, %c0_0] : memref<8x256xf32, #tpu.memory_space<vmem>>, vector<8x256xf32>
    %1 = arith.truncf %0 : vector<8x256xf32> to vector<8x256xbf16>
    %c0_1 = arith.constant 0 : index
    %c0_2 = arith.constant 0 : index
    %2 = vector.load %arg2[%c0_1, %c0_2] : memref<256x128xbf16, #tpu.memory_space<vmem>>, vector<256x128xbf16>
    %cst = arith.constant dense<0.000000e+00> : vector<8x128xf32>
    %3 = tpu.matmul %1, %2, %cst {dimension_numbers = #tpu.dot_dimension_numbers<[1], [0], [0], [1], [0, 0, 1, 1], [], []>} : vector<8x256xbf16>, vector<256x128xbf16>, vector<8x128xf32> -> vector<8x128xf32>
    %c0_3 = arith.constant 0 : index
    %c0_4 = arith.constant 0 : index
    %4 = vector.load %arg3[%c0_3, %c0_4] : memref<1x128xf32, #tpu.memory_space<vmem>>, vector<1x128xf32>
    %5 = vector.broadcast %4 : vector<1x128xf32> to vector<8x128xf32>
    %6 = arith.addf %3, %5 : vector<8x128xf32>
    %cst_5 = arith.constant 0.000000e+00 : f32
    %7 = vector.broadcast %cst_5 : f32 to vector<8x128xf32>
    %8 = arith.maximumf %6, %7 : vector<8x128xf32>
    %9 = arith.truncf %8 : vector<8x128xf32> to vector<8x128xbf16>
    %c0_6 = arith.constant 0 : index
    %c0_7 = arith.constant 0 : index
    %10 = vector.load %arg4[%c0_6, %c0_7] : memref<128x128xbf16, #tpu.memory_space<vmem>>, vector<128x128xbf16>
    %cst_8 = arith.constant dense<0.000000e+00> : vector<8x128xf32>
    %11 = tpu.matmul %9, %10, %cst_8 {dimension_numbers = #tpu.dot_dimension_numbers<[1], [0], [0], [1], [0, 0, 1, 1], [], []>} : vector<8x128xbf16>, vector<128x128xbf16>, vector<8x128xf32> -> vector<8x128xf32>
    %c0_9 = arith.constant 0 : index
    %c0_10 = arith.constant 0 : index
    %12 = vector.load %arg5[%c0_9, %c0_10] : memref<1x128xf32, #tpu.memory_space<vmem>>, vector<1x128xf32>
    %13 = vector.broadcast %12 : vector<1x128xf32> to vector<8x128xf32>
    %14 = arith.addf %11, %13 : vector<8x128xf32>
    %cst_11 = arith.constant 0.000000e+00 : f32
    %15 = vector.broadcast %cst_11 : f32 to vector<8x128xf32>
    %16 = arith.maximumf %14, %15 : vector<8x128xf32>
    %17 = arith.truncf %16 : vector<8x128xf32> to vector<8x128xbf16>
    %c0_12 = arith.constant 0 : index
    %c0_13 = arith.constant 0 : index
    %18 = vector.load %arg6[%c0_12, %c0_13] : memref<128x128xbf16, #tpu.memory_space<vmem>>, vector<128x128xbf16>
    %cst_14 = arith.constant dense<0.000000e+00> : vector<8x128xf32>
    %19 = tpu.matmul %17, %18, %cst_14 {dimension_numbers = #tpu.dot_dimension_numbers<[1], [0], [0], [1], [0, 0, 1, 1], [], []>} : vector<8x128xbf16>, vector<128x128xbf16>, vector<8x128xf32> -> vector<8x128xf32>
    %c0_15 = arith.constant 0 : index
    %c0_16 = arith.constant 0 : index
    %20 = vector.load %arg7[%c0_15, %c0_16] : memref<1x128xf32, #tpu.memory_space<vmem>>, vector<1x128xf32>
    %21 = vector.broadcast %20 : vector<1x128xf32> to vector<8x128xf32>
    %22 = arith.addf %19, %21 : vector<8x128xf32>
    %cst_17 = arith.constant 0.000000e+00 : f32
    %23 = vector.broadcast %cst_17 : f32 to vector<8x128xf32>
    %24 = arith.maximumf %22, %23 : vector<8x128xf32>
    %25 = arith.truncf %24 : vector<8x128xf32> to vector<8x128xbf16>
    %c0_18 = arith.constant 0 : index
    %c0_19 = arith.constant 0 : index
    %26 = vector.load %arg8[%c0_18, %c0_19] : memref<128x128xbf16, #tpu.memory_space<vmem>>, vector<128x128xbf16>
    %cst_20 = arith.constant dense<0.000000e+00> : vector<8x128xf32>
    %27 = tpu.matmul %25, %26, %cst_20 {dimension_numbers = #tpu.dot_dimension_numbers<[1], [0], [0], [1], [0, 0, 1, 1], [], []>} : vector<8x128xbf16>, vector<128x128xbf16>, vector<8x128xf32> -> vector<8x128xf32>
    %c0_21 = arith.constant 0 : index
    %c0_22 = arith.constant 0 : index
    %28 = vector.load %arg9[%c0_21, %c0_22] : memref<1x128xf32, #tpu.memory_space<vmem>>, vector<1x128xf32>
    %29 = vector.broadcast %28 : vector<1x128xf32> to vector<8x128xf32>
    %30 = arith.addf %27, %29 : vector<8x128xf32>
    %cst_23 = arith.constant 0.000000e+00 : f32
    %31 = vector.broadcast %cst_23 : f32 to vector<8x128xf32>
    %32 = arith.maximumf %30, %31 : vector<8x128xf32>
    %cst_24 = arith.constant dense<0xFF800000> : vector<8xf32>
    %33 = vector.multi_reduction <maximumf>, %32, %cst_24 [1] : vector<8x128xf32> to vector<8xf32>
    %34 = vector.shape_cast %33 : vector<8xf32> to vector<8x1xf32>
    %35 = vector.broadcast %34 : vector<8x1xf32> to vector<8x128xf32>
    %36 = arith.subf %32, %35 : vector<8x128xf32>
    %37 = math.exp %36 : vector<8x128xf32>
    %cst_25 = arith.constant dense<0.000000e+00> : vector<8xf32>
    %38 = vector.multi_reduction <add>, %37, %cst_25 [1] : vector<8x128xf32> to vector<8xf32>
    %39 = vector.shape_cast %38 : vector<8xf32> to vector<8x1xf32>
    %40 = vector.broadcast %39 : vector<8x1xf32> to vector<8x128xf32>
    %41 = arith.divf %37, %40 : vector<8x128xf32>
    %c0_26 = arith.constant 0 : index
    %c0_27 = arith.constant 0 : index
    %42 = vector.load %arg10[%c0_26, %c0_27] : memref<8x128xf32, #tpu.memory_space<vmem>>, vector<8x128xf32>
    tpu.vector_store %arg10[%c0_26, %c0_27], %41 {strides = array<i32>} : memref<8x128xf32, #tpu.memory_space<vmem>>, vector<8x128xf32>,
    return
  }
  func.func @transform_0(%arg0: i32) -> (i32, i32) {
    %c0_i32 = arith.constant 0 : i32
    %c0_i32_0 = arith.constant 0 : i32
    return %arg0, %c0_i32 : i32, i32
  }
  func.func @transform_1(%arg0: i32) -> (i32, i32) {
    %c0_i32 = arith.constant 0 : i32
    %c0_i32_0 = arith.constant 0 : i32
    %c0_i32_1 = arith.constant 0 : i32
    return %c0_i32, %c0_i32_0 : i32, i32
  }
  func.func @transform_2(%arg0: i32) -> (i32, i32) {
    %c0_i32 = arith.constant 0 : i32
    %c0_i32_0 = arith.constant 0 : i32
    %c0_i32_1 = arith.constant 0 : i32
    return %c0_i32, %c0_i32_0 : i32, i32
  }
  func.func @transform_3(%arg0: i32) -> (i32, i32) {
    %c0_i32 = arith.constant 0 : i32
    %c0_i32_0 = arith.constant 0 : i32
    %c0_i32_1 = arith.constant 0 : i32
    return %c0_i32, %c0_i32_0 : i32, i32
  }
  func.func @transform_4(%arg0: i32) -> (i32, i32) {
    %c0_i32 = arith.constant 0 : i32
    %c0_i32_0 = arith.constant 0 : i32
    %c0_i32_1 = arith.constant 0 : i32
    return %c0_i32, %c0_i32_0 : i32, i32
  }
  func.func @transform_5(%arg0: i32) -> (i32, i32) {
    %c0_i32 = arith.constant 0 : i32
    %c0_i32_0 = arith.constant 0 : i32
    %c0_i32_1 = arith.constant 0 : i32
    return %c0_i32, %c0_i32_0 : i32, i32
  }
  func.func @transform_6(%arg0: i32) -> (i32, i32) {
    %c0_i32 = arith.constant 0 : i32
    %c0_i32_0 = arith.constant 0 : i32
    %c0_i32_1 = arith.constant 0 : i32
    return %c0_i32, %c0_i32_0 : i32, i32
  }
  func.func @transform_7(%arg0: i32) -> (i32, i32) {
    %c0_i32 = arith.constant 0 : i32
    %c0_i32_0 = arith.constant 0 : i32
    %c0_i32_1 = arith.constant 0 : i32
    return %c0_i32, %c0_i32_0 : i32, i32
  }
  func.func @transform_8(%arg0: i32) -> (i32, i32) {
    %c0_i32 = arith.constant 0 : i32
    %c0_i32_0 = arith.constant 0 : i32
    %c0_i32_1 = arith.constant 0 : i32
    return %c0_i32, %c0_i32_0 : i32, i32
  }
  func.func @transform_9(%arg0: i32) -> (i32, i32) {
    %c0_i32 = arith.constant 0 : i32
    %c0_i32_0 = arith.constant 0 : i32
    return %arg0, %c0_i32 : i32, i32
  }
}

</mosaic_0001>

<llo_original>
// kernel: mlp_forward.1
$region0: #{mlp_forward.1}
  #allocation0 [shape = 'u32[]', space=smem, size = 0x4, offset = 0x4, fixed_abs, tag = 'smem constant byte address 0x4 - core index']
  #allocation1 [shape = 'u32[144,128]{1,0:T(1,128)}', space=vmem, size = 0x12000, scoped, tag = 'internal scratch']
  %s0 = inlined_call_operand.vmem [shape: f32[8,256], index: 0, kind: input, shape index: {}]
  %s1 = inlined_call_operand.vmem [shape: bf16[256,128], index: 1, kind: input, shape index: {}]
  %s2 = inlined_call_operand.vmem [shape: f32[1,128], index: 2, kind: input, shape index: {}]
  %s3 = inlined_call_operand.vmem [shape: bf16[128,128], index: 3, kind: input, shape index: {}]
  %s4 = inlined_call_operand.vmem [shape: f32[1,128], index: 4, kind: input, shape index: {}]
  %s5 = inlined_call_operand.vmem [shape: bf16[128,128], index: 5, kind: input, shape index: {}]
  %s6 = inlined_call_operand.vmem [shape: f32[1,128], index: 6, kind: input, shape index: {}]
  %s7 = inlined_call_operand.vmem [shape: bf16[128,128], index: 7, kind: input, shape index: {}]
  %s8 = inlined_call_operand.vmem [shape: f32[1,128], index: 8, kind: input, shape index: {}]
  %s9 = inlined_call_operand.hbm [shape: f32[8,128], index: 9, kind: output, shape index: {}]
  %s10 = sld [smem:[#allocation0]]
  $region46: #{mlp_forward.1} parent=0
    _
  %s12 = ssub.s32 1, %s10
  %s13 = scalar_select 0, %s12, %s10
  $region1: #{mlp_forward.1} parent=0
    #allocation2 [shape = 'u8[4096]{0}', space=vmem, size = 0x1000, scoped, tag = 'output window, operand 0, single buffered']
    #allocation3 [shape = 's32[1]{0}', space=sflag, size = 0x4, scoped, tag = 'scoped memory for mlp_forward.1']
    %14 = vsyncpa [#allocation3], 0
    // Predicated region
    $region2: #{mlp_forward.1} parent=1 // pred_check
      _
    $region3: #{mlp_forward.1} parent=1 // pred_check_branch
      %16 = sbr.rel (0) target = $region5
    $region4: #{mlp_forward.1} parent=1 // pred_region
      _
    $region5: #{mlp_forward.1} parent=1 // pred_fallthru
      _
    // Predicated region
    $region6: #{mlp_forward.1} parent=1 // pred_check
      _
    $region7: #{mlp_forward.1} parent=1 // pred_check_branch
      %18 = sbr.rel (0) target = $region9
    $region8: #{mlp_forward.1} parent=1 // pred_region
      _
    $region9: #{mlp_forward.1} parent=1 // pred_fallthru
      _
    // Predicated region
    $region10: #{mlp_forward.1} parent=1 // pred_check
      _
    $region11: #{mlp_forward.1} parent=1 // pred_check_branch
      %20 = sbr.rel (0) target = $region13
    $region12: #{mlp_forward.1} parent=1 // pred_region
      _
    $region13: #{mlp_forward.1} parent=1 // pred_fallthru
      _
    // Predicated region
    $region14: #{mlp_forward.1} parent=1 // pred_check
      _
    $region15: #{mlp_forward.1} parent=1 // pred_check_branch
      %22 = sbr.rel (0) target = $region17
    $region16: #{mlp_forward.1} parent=1 // pred_region
      _
    $region17: #{mlp_forward.1} parent=1 // pred_fallthru
      _
    // Predicated region
    $region18: #{mlp_forward.1} parent=1 // pred_check
      _
    $region19: #{mlp_forward.1} parent=1 // pred_check_branch
      %24 = sbr.rel (0) target = $region21
    $region20: #{mlp_forward.1} parent=1 // pred_region
      _
    $region21: #{mlp_forward.1} parent=1 // pred_fallthru
      _
    // Predicated region
    $region22: #{mlp_forward.1} parent=1 // pred_check
      _
    $region23: #{mlp_forward.1} parent=1 // pred_check_branch
      %26 = sbr.rel (0) target = $region25
    $region24: #{mlp_forward.1} parent=1 // pred_region
      _
    $region25: #{mlp_forward.1} parent=1 // pred_fallthru
      _
    // Predicated region
    $region26: #{mlp_forward.1} parent=1 // pred_check
      _
    $region27: #{mlp_forward.1} parent=1 // pred_check_branch
      %28 = sbr.rel (0) target = $region29
    $region28: #{mlp_forward.1} parent=1 // pred_region
      _
    $region29: #{mlp_forward.1} parent=1 // pred_fallthru
      _
    // Predicated region
    $region30: #{mlp_forward.1} parent=1 // pred_check
      _
    $region31: #{mlp_forward.1} parent=1 // pred_check_branch
      %30 = sbr.rel (0) target = $region33
    $region32: #{mlp_forward.1} parent=1 // pred_region
      _
    $region33: #{mlp_forward.1} parent=1 // pred_fallthru
      _
    // Predicated region
    $region34: #{mlp_forward.1} parent=1 // pred_check
      _
    $region35: #{mlp_forward.1} parent=1 // pred_check_branch
      %32 = sbr.rel (0) target = $region37
    $region36: #{mlp_forward.1} parent=1 // pred_region
      _
    $region37: #{mlp_forward.1} parent=1 // pred_fallthru
      _
    %v34 = vld [vmem:[%s0] sm:$0xff]
    %v35 = vld [vmem:[%s0 + $0x8] sm:$0xff]
    %v36 = vpack.c.bf16 %v34, %v34
    %v37 = vpack.c.bf16 %v35, %v35
    %v38 = vld [vmem:[%s1] sm:$0xf]
    %v39 = vld [vmem:[%s1 + $0x4] sm:$0xf]
    %v40 = vld [vmem:[%s1 + $0x8] sm:$0xf]
    %v41 = vld [vmem:[%s1 + $0xc] sm:$0xf]
    %v42 = vld [vmem:[%s1 + $0x10] sm:$0xf]
    %v43 = vld [vmem:[%s1 + $0x14] sm:$0xf]
    %v44 = vld [vmem:[%s1 + $0x18] sm:$0xf]
    %v45 = vld [vmem:[%s1 + $0x1c] sm:$0xf]
    %v46 = vld [vmem:[%s1 + $0x20] sm:$0xf]
    %v47 = vld [vmem:[%s1 + $0x24] sm:$0xf]
    %v48 = vld [vmem:[%s1 + $0x28] sm:$0xf]
    %v49 = vld [vmem:[%s1 + $0x2c] sm:$0xf]
    %v50 = vld [vmem:[%s1 + $0x30] sm:$0xf]
    %v51 = vld [vmem:[%s1 + $0x34] sm:$0xf]
    %v52 = vld [vmem:[%s1 + $0x38] sm:$0xf]
    %v53 = vld [vmem:[%s1 + $0x3c] sm:$0xf]
    %v54 = vld [vmem:[%s1 + $0x40] sm:$0xf]
    %v55 = vld [vmem:[%s1 + $0x44] sm:$0xf]
    %v56 = vld [vmem:[%s1 + $0x48] sm:$0xf]
    %v57 = vld [vmem:[%s1 + $0x4c] sm:$0xf]
    %v58 = vld [vmem:[%s1 + $0x50] sm:$0xf]
    %v59 = vld [vmem:[%s1 + $0x54] sm:$0xf]
    %v60 = vld [vmem:[%s1 + $0x58] sm:$0xf]
    %v61 = vld [vmem:[%s1 + $0x5c] sm:$0xf]
    %v62 = vld [vmem:[%s1 + $0x60] sm:$0xf]
    %v63 = vld [vmem:[%s1 + $0x64] sm:$0xf]
    %v64 = vld [vmem:[%s1 + $0x68] sm:$0xf]
    %v65 = vld [vmem:[%s1 + $0x6c] sm:$0xf]
    %v66 = vld [vmem:[%s1 + $0x70] sm:$0xf]
    %v67 = vld [vmem:[%s1 + $0x74] sm:$0xf]
    %v68 = vld [vmem:[%s1 + $0x78] sm:$0xf]
    %v69 = vld [vmem:[%s1 + $0x7c] sm:$0xf]
    %v70 = vld [vmem:[%s2] sm:$0x1]
    %v72 = vlaneseq
    %v73 = vshrl.u32 %v72, 7
    %v74 = vsub.s32 0, %v73
    %v75 = vrot.slane %v70, %v74
    %v109 = vunpack.c.l.b16 %v38
    %v110 = vunpack.c.l.b16 %v39
    %v111 = vunpack.c.l.b16 %v40
    %v112 = vunpack.c.l.b16 %v41
    %v113 = vunpack.c.l.b16 %v42
    %v114 = vunpack.c.l.b16 %v43
    %v115 = vunpack.c.l.b16 %v44
    %v116 = vunpack.c.l.b16 %v45
    %v117 = vunpack.c.l.b16 %v46
    %v118 = vunpack.c.l.b16 %v47
    %v119 = vunpack.c.l.b16 %v48
    %v120 = vunpack.c.l.b16 %v49
    %v121 = vunpack.c.l.b16 %v50
    %v122 = vunpack.c.l.b16 %v51
    %v123 = vunpack.c.l.b16 %v52
    %v124 = vunpack.c.l.b16 %v53
    %v125 = vunpack.c.l.b16 %v54
    %v126 = vunpack.c.l.b16 %v55
    %v127 = vunpack.c.l.b16 %v56
    %v128 = vunpack.c.l.b16 %v57
    %v129 = vunpack.c.l.b16 %v58
    %v130 = vunpack.c.l.b16 %v59
    %v131 = vunpack.c.l.b16 %v60
    %v132 = vunpack.c.l.b16 %v61
    %v133 = vunpack.c.l.b16 %v62
    %v134 = vunpack.c.l.b16 %v63
    %v135 = vunpack.c.l.b16 %v64
    %v136 = vunpack.c.l.b16 %v65
    %v137 = vunpack.c.l.b16 %v66
    %v138 = vunpack.c.l.b16 %v67
    %v139 = vunpack.c.l.b16 %v68
    %v140 = vunpack.c.l.b16 %v69
    %v141 = vpack.c.b16 %v110, %v109
    %v142 = vpack.c.b16 %v112, %v111
    %v143 = vpack.c.b16 %v114, %v113
    %v144 = vpack.c.b16 %v116, %v115
    %v145 = vpack.c.b16 %v118, %v117
    %v146 = vpack.c.b16 %v120, %v119
    %v147 = vpack.c.b16 %v122, %v121
    %v148 = vpack.c.b16 %v124, %v123
    %v149 = vpack.c.b16 %v126, %v125
    %v150 = vpack.c.b16 %v128, %v127
    %v151 = vpack.c.b16 %v130, %v129
    %v152 = vpack.c.b16 %v132, %v131
    %v153 = vpack.c.b16 %v134, %v133
    %v154 = vpack.c.b16 %v136, %v135
    %v155 = vpack.c.b16 %v138, %v137
    %v156 = vpack.c.b16 %v140, %v139
    %173 = vmatprep.subr.bf16.mxu0 0
    %174 = vmatpush1.bf16.msra.mxu0 %v148
    %175 = vmatprep.subr.bf16.mxu0 0
    %176 = vmatpush1.bf16.msra.mxu0 %v147
    %177 = vmatprep.subr.bf16.mxu0 0
    %178 = vmatpush1.bf16.msra.mxu0 %v146
    %179 = vmatprep.subr.bf16.mxu0 0
    %180 = vmatpush1.bf16.msra.mxu0 %v145
    %181 = vmatprep.subr.bf16.mxu0 0
    %182 = vmatpush1.bf16.msra.mxu0 %v144
    %183 = vmatprep.subr.bf16.mxu0 0
    %184 = vmatpush1.bf16.msra.mxu0 %v143
    %185 = vmatprep.subr.bf16.mxu0 0
    %186 = vmatpush1.bf16.msra.mxu0 %v142
    %187 = vmatprep.subr.bf16.mxu0 0
    %188 = vmatpush1.bf16.msra.mxu0 %v141
    %189 = vmatprep.subr.bf16.mxu0 0
    %190 = vmatpush2.bf16.msra.mxu0 %v156
    %191 = vmatprep.subr.bf16.mxu0 0
    %192 = vmatpush2.bf16.msra.mxu0 %v155
    %193 = vmatprep.subr.bf16.mxu0 0
    %194 = vmatpush2.bf16.msra.mxu0 %v154
    %195 = vmatprep.subr.bf16.mxu0 0
    %196 = vmatpush2.bf16.msra.mxu0 %v153
    %197 = vmatprep.subr.bf16.mxu0 0
    %198 = vmatpush2.bf16.msra.mxu0 %v152
    %199 = vmatprep.subr.bf16.mxu0 0
    %200 = vmatpush2.bf16.msra.mxu0 %v151
    %201 = vmatprep.subr.bf16.mxu0 0
    %202 = vmatpush2.bf16.msra.mxu0 %v150
    %203 = vmatprep.subr.bf16.mxu0 0
    %204 = vmatpush2.bf16.msra.mxu0 %v149
    %205 = vmatprep.mubr.bf16.mxu0 %v37
    %206 = vmatmul.mubr.bf16.gmra.mxu0 %v36
    %v207 = vpop.f32.mrf.mxu0
    %v208 = vadd.f32 %v75, %v207
    %v209 = vpop.f32.mrf.mxu0
    %v210 = vpop.f32.mrf.mxu0
    %v211 = vpop.f32.mrf.mxu0
    %212 = vdwg.mxu0
    %v213 = vmax.f32 %v208, 0.0
    %v214 = vpack.c.bf16 %v213, %v213
    %v215 = vld [vmem:[%s3] sm:$0xf]
    %v216 = vld [vmem:[%s3 + $0x4] sm:$0xf]
    %v217 = vld [vmem:[%s3 + $0x8] sm:$0xf]
    %v218 = vld [vmem:[%s3 + $0xc] sm:$0xf]
    %v219 = vld [vmem:[%s3 + $0x10] sm:$0xf]
    %v220 = vld [vmem:[%s3 + $0x14] sm:$0xf]
    %v221 = vld [vmem:[%s3 + $0x18] sm:$0xf]
    %v222 = vld [vmem:[%s3 + $0x1c] sm:$0xf]
    %v223 = vld [vmem:[%s3 + $0x20] sm:$0xf]
    %v224 = vld [vmem:[%s3 + $0x24] sm:$0xf]
    %v225 = vld [vmem:[%s3 + $0x28] sm:$0xf]
    %v226 = vld [vmem:[%s3 + $0x2c] sm:$0xf]
    %v227 = vld [vmem:[%s3 + $0x30] sm:$0xf]
    %v228 = vld [vmem:[%s3 + $0x34] sm:$0xf]
    %v229 = vld [vmem:[%s3 + $0x38] sm:$0xf]
    %v230 = vld [vmem:[%s3 + $0x3c] sm:$0xf]
    %v231 = vld [vmem:[%s4] sm:$0x1]
    %v233 = vlaneseq
    %v234 = vshrl.u32 %v233, 7
    %v235 = vsub.s32 0, %v234
    %v236 = vrot.slane %v231, %v235
    %v254 = vunpack.c.l.b16 %v215
    %v255 = vunpack.c.l.b16 %v216
    %v256 = vunpack.c.l.b16 %v217
    %v257 = vunpack.c.l.b16 %v218
    %v258 = vunpack.c.l.b16 %v219
    %v259 = vunpack.c.l.b16 %v220
    %v260 = vunpack.c.l.b16 %v221
    %v261 = vunpack.c.l.b16 %v222
    %v262 = vunpack.c.l.b16 %v223
    %v263 = vunpack.c.l.b16 %v224
    %v264 = vunpack.c.l.b16 %v225
    %v265 = vunpack.c.l.b16 %v226
    %v266 = vunpack.c.l.b16 %v227
    %v267 = vunpack.c.l.b16 %v228
    %v268 = vunpack.c.l.b16 %v229
    %v269 = vunpack.c.l.b16 %v230
    %v270 = vpack.c.b16 %v255, %v254
    %v271 = vpack.c.b16 %v257, %v256
    %v272 = vpack.c.b16 %v259, %v258
    %v273 = vpack.c.b16 %v261, %v260
    %v274 = vpack.c.b16 %v263, %v262
    %v275 = vpack.c.b16 %v265, %v264
    %v276 = vpack.c.b16 %v267, %v266
    %v277 = vpack.c.b16 %v269, %v268
    %286 = vmatprep.subr.bf16.mxu0 0
    %287 = vmatpush1.bf16.msra.mxu0 %v277
    %288 = vmatprep.subr.bf16.mxu0 0
    %289 = vmatpush1.bf16.msra.mxu0 %v276
    %290 = vmatprep.subr.bf16.mxu0 0
    %291 = vmatpush1.bf16.msra.mxu0 %v275
    %292 = vmatprep.subr.bf16.mxu0 0
    %293 = vmatpush1.bf16.msra.mxu0 %v274
    %294 = vmatprep.subr.bf16.mxu0 0
    %295 = vmatpush1.bf16.msra.mxu0 %v273
    %296 = vmatprep.subr.bf16.mxu0 0
    %297 = vmatpush1.bf16.msra.mxu0 %v272
    %298 = vmatprep.subr.bf16.mxu0 0
    %299 = vmatpush1.bf16.msra.mxu0 %v271
    %300 = vmatprep.subr.bf16.mxu0 0
    %301 = vmatpush1.bf16.msra.mxu0 %v270
    %302 = vmatprep.subr.bf16.mxu0 0
    %303 = vmatpush2.bf16.msra.mxu0 0
    %304 = vmatprep.subr.bf16.mxu0 0
    %305 = vmatpush2.bf16.msra.mxu0 0
    %306 = vmatprep.subr.bf16.mxu0 0
    %307 = vmatpush2.bf16.msra.mxu0 0
    %308 = vmatprep.subr.bf16.mxu0 0
    %309 = vmatpush2.bf16.msra.mxu0 0
    %310 = vmatprep.subr.bf16.mxu0 0
    %311 = vmatpush2.bf16.msra.mxu0 0
    %312 = vmatprep.subr.bf16.mxu0 0
    %313 = vmatpush2.bf16.msra.mxu0 0
    %314 = vmatprep.subr.bf16.mxu0 0
    %315 = vmatpush2.bf16.msra.mxu0 0
    %316 = vmatprep.subr.bf16.mxu0 0
    %317 = vmatpush2.bf16.msra.mxu0 0
    %318 = vmatprep.mubr.bf16.mxu0 0
    %319 = vmatmul.mubr.bf16.gmra.mxu0 %v214
    %v320 = vpop.f32.mrf.mxu0
    %v321 = vadd.f32 %v236, %v320
    %v322 = vpop.f32.mrf.mxu0
    %v323 = vpop.f32.mrf.mxu0
    %v324 = vpop.f32.mrf.mxu0
    %325 = vdwg.mxu0
    %v326 = vmax.f32 %v321, 0.0
    %v327 = vpack.c.bf16 %v326, %v326
    %v328 = vld [vmem:[%s5] sm:$0xf]
    %v329 = vld [vmem:[%s5 + $0x4] sm:$0xf]
    %v330 = vld [vmem:[%s5 + $0x8] sm:$0xf]
    %v331 = vld [vmem:[%s5 + $0xc] sm:$0xf]
    %v332 = vld [vmem:[%s5 + $0x10] sm:$0xf]
    %v333 = vld [vmem:[%s5 + $0x14] sm:$0xf]
    %v334 = vld [vmem:[%s5 + $0x18] sm:$0xf]
    %v335 = vld [vmem:[%s5 + $0x1c] sm:$0xf]
    %v336 = vld [vmem:[%s5 + $0x20] sm:$0xf]
    %v337 = vld [vmem:[%s5 + $0x24] sm:$0xf]
    %v338 = vld [vmem:[%s5 + $0x28] sm:$0xf]
    %v339 = vld [vmem:[%s5 + $0x2c] sm:$0xf]
    %v340 = vld [vmem:[%s5 + $0x30] sm:$0xf]
    %v341 = vld [vmem:[%s5 + $0x34] sm:$0xf]
    %v342 = vld [vmem:[%s5 + $0x38] sm:$0xf]
    %v343 = vld [vmem:[%s5 + $0x3c] sm:$0xf]
    %v344 = vld [vmem:[%s6] sm:$0x1]
    %v346 = vlaneseq
    %v347 = vshrl.u32 %v346, 7
    %v348 = vsub.s32 0, %v347
    %v349 = vrot.slane %v344, %v348
    %v367 = vunpack.c.l.b16 %v328
    %v368 = vunpack.c.l.b16 %v329
    %v369 = vunpack.c.l.b16 %v330
    %v370 = vunpack.c.l.b16 %v331
    %v371 = vunpack.c.l.b16 %v332
    %v372 = vunpack.c.l.b16 %v333
    %v373 = vunpack.c.l.b16 %v334
    %v374 = vunpack.c.l.b16 %v335
    %v375 = vunpack.c.l.b16 %v336
    %v376 = vunpack.c.l.b16 %v337
    %v377 = vunpack.c.l.b16 %v338
    %v378 = vunpack.c.l.b16 %v339
    %v379 = vunpack.c.l.b16 %v340
    %v380 = vunpack.c.l.b16 %v341
    %v381 = vunpack.c.l.b16 %v342
    %v382 = vunpack.c.l.b16 %v343
    %v383 = vpack.c.b16 %v368, %v367
    %v384 = vpack.c.b16 %v370, %v369
    %v385 = vpack.c.b16 %v372, %v371
    %v386 = vpack.c.b16 %v374, %v373
    %v387 = vpack.c.b16 %v376, %v375
    %v388 = vpack.c.b16 %v378, %v377
    %v389 = vpack.c.b16 %v380, %v379
    %v390 = vpack.c.b16 %v382, %v381
    %399 = vmatprep.subr.bf16.mxu0 0
    %400 = vmatpush1.bf16.msra.mxu0 %v390
    %401 = vmatprep.subr.bf16.mxu0 0
    %402 = vmatpush1.bf16.msra.mxu0 %v389
    %403 = vmatprep.subr.bf16.mxu0 0
    %404 = vmatpush1.bf16.msra.mxu0 %v388
    %405 = vmatprep.subr.bf16.mxu0 0
    %406 = vmatpush1.bf16.msra.mxu0 %v387
    %407 = vmatprep.subr.bf16.mxu0 0
    %408 = vmatpush1.bf16.msra.mxu0 %v386
    %409 = vmatprep.subr.bf16.mxu0 0
    %410 = vmatpush1.bf16.msra.mxu0 %v385
    %411 = vmatprep.subr.bf16.mxu0 0
    %412 = vmatpush1.bf16.msra.mxu0 %v384
    %413 = vmatprep.subr.bf16.mxu0 0
    %414 = vmatpush1.bf16.msra.mxu0 %v383
    %415 = vmatprep.subr.bf16.mxu0 0
    %416 = vmatpush2.bf16.msra.mxu0 0
    %417 = vmatprep.subr.bf16.mxu0 0
    %418 = vmatpush2.bf16.msra.mxu0 0
    %419 = vmatprep.subr.bf16.mxu0 0
    %420 = vmatpush2.bf16.msra.mxu0 0
    %421 = vmatprep.subr.bf16.mxu0 0
    %422 = vmatpush2.bf16.msra.mxu0 0
    %423 = vmatprep.subr.bf16.mxu0 0
    %424 = vmatpush2.bf16.msra.mxu0 0
    %425 = vmatprep.subr.bf16.mxu0 0
    %426 = vmatpush2.bf16.msra.mxu0 0
    %427 = vmatprep.subr.bf16.mxu0 0
    %428 = vmatpush2.bf16.msra.mxu0 0
    %429 = vmatprep.subr.bf16.mxu0 0
    %430 = vmatpush2.bf16.msra.mxu0 0
    %431 = vmatprep.mubr.bf16.mxu0 0
    %432 = vmatmul.mubr.bf16.gmra.mxu0 %v327
    %v433 = vpop.f32.mrf.mxu0
    %v434 = vadd.f32 %v349, %v433
    %v435 = vpop.f32.mrf.mxu0
    %v436 = vpop.f32.mrf.mxu0
    %v437 = vpop.f32.mrf.mxu0
    %438 = vdwg.mxu0
    %v439 = vmax.f32 %v434, 0.0
    %v440 = vpack.c.bf16 %v439, %v439
    %v441 = vld [vmem:[%s7] sm:$0xf]
    %v442 = vld [vmem:[%s7 + $0x4] sm:$0xf]
    %v443 = vld [vmem:[%s7 + $0x8] sm:$0xf]
    %v444 = vld [vmem:[%s7 + $0xc] sm:$0xf]
    %v445 = vld [vmem:[%s7 + $0x10] sm:$0xf]
    %v446 = vld [vmem:[%s7 + $0x14] sm:$0xf]
    %v447 = vld [vmem:[%s7 + $0x18] sm:$0xf]
    %v448 = vld [vmem:[%s7 + $0x1c] sm:$0xf]
    %v449 = vld [vmem:[%s7 + $0x20] sm:$0xf]
    %v450 = vld [vmem:[%s7 + $0x24] sm:$0xf]
    %v451 = vld [vmem:[%s7 + $0x28] sm:$0xf]
    %v452 = vld [vmem:[%s7 + $0x2c] sm:$0xf]
    %v453 = vld [vmem:[%s7 + $0x30] sm:$0xf]
    %v454 = vld [vmem:[%s7 + $0x34] sm:$0xf]
    %v455 = vld [vmem:[%s7 + $0x38] sm:$0xf]
    %v456 = vld [vmem:[%s7 + $0x3c] sm:$0xf]
    %v457 = vld [vmem:[%s8] sm:$0x1]
    %v459 = vlaneseq
    %v460 = vshrl.u32 %v459, 7
    %v461 = vsub.s32 0, %v460
    %v462 = vrot.slane %v457, %v461
    %v480 = vunpack.c.l.b16 %v441
    %v481 = vunpack.c.l.b16 %v442
    %v482 = vunpack.c.l.b16 %v443
    %v483 = vunpack.c.l.b16 %v444
    %v484 = vunpack.c.l.b16 %v445
    %v485 = vunpack.c.l.b16 %v446
    %v486 = vunpack.c.l.b16 %v447
    %v487 = vunpack.c.l.b16 %v448
    %v488 = vunpack.c.l.b16 %v449
    %v489 = vunpack.c.l.b16 %v450
    %v490 = vunpack.c.l.b16 %v451
    %v491 = vunpack.c.l.b16 %v452
    %v492 = vunpack.c.l.b16 %v453
    %v493 = vunpack.c.l.b16 %v454
    %v494 = vunpack.c.l.b16 %v455
    %v495 = vunpack.c.l.b16 %v456
    %v496 = vpack.c.b16 %v481, %v480
    %v497 = vpack.c.b16 %v483, %v482
    %v498 = vpack.c.b16 %v485, %v484
    %v499 = vpack.c.b16 %v487, %v486
    %v500 = vpack.c.b16 %v489, %v488
    %v501 = vpack.c.b16 %v491, %v490
    %v502 = vpack.c.b16 %v493, %v492
    %v503 = vpack.c.b16 %v495, %v494
    %512 = vmatprep.subr.bf16.mxu0 0
    %513 = vmatpush1.bf16.msra.mxu0 %v503
    %514 = vmatprep.subr.bf16.mxu0 0
    %515 = vmatpush1.bf16.msra.mxu0 %v502
    %516 = vmatprep.subr.bf16.mxu0 0
    %517 = vmatpush1.bf16.msra.mxu0 %v501
    %518 = vmatprep.subr.bf16.mxu0 0
    %519 = vmatpush1.bf16.msra.mxu0 %v500
    %520 = vmatprep.subr.bf16.mxu0 0
    %521 = vmatpush1.bf16.msra.mxu0 %v499
    %522 = vmatprep.subr.bf16.mxu0 0
    %523 = vmatpush1.bf16.msra.mxu0 %v498
    %524 = vmatprep.subr.bf16.mxu0 0
    %525 = vmatpush1.bf16.msra.mxu0 %v497
    %526 = vmatprep.subr.bf16.mxu0 0
    %527 = vmatpush1.bf16.msra.mxu0 %v496
    %528 = vmatprep.subr.bf16.mxu0 0
    %529 = vmatpush2.bf16.msra.mxu0 0
    %530 = vmatprep.subr.bf16.mxu0 0
    %531 = vmatpush2.bf16.msra.mxu0 0
    %532 = vmatprep.subr.bf16.mxu0 0
    %533 = vmatpush2.bf16.msra.mxu0 0
    %534 = vmatprep.subr.bf16.mxu0 0
    %535 = vmatpush2.bf16.msra.mxu0 0
    %536 = vmatprep.subr.bf16.mxu0 0
    %537 = vmatpush2.bf16.msra.mxu0 0
    %538 = vmatprep.subr.bf16.mxu0 0
    %539 = vmatpush2.bf16.msra.mxu0 0
    %540 = vmatprep.subr.bf16.mxu0 0
    %541 = vmatpush2.bf16.msra.mxu0 0
    %542 = vmatprep.subr.bf16.mxu0 0
    %543 = vmatpush2.bf16.msra.mxu0 0
    %544 = vmatprep.mubr.bf16.mxu0 0
    %545 = vmatmul.mubr.bf16.gmra.mxu0 %v440
    %v546 = vpop.f32.mrf.mxu0
    %v547 = vadd.f32 %v462, %v546
    %v548 = vpop.f32.mrf.mxu0
    %v549 = vpop.f32.mrf.mxu0
    %v550 = vpop.f32.mrf.mxu0
    %551 = vdwg.mxu0
    %v552 = vmax.f32 %v547, 0.0
    %553 = vmax.xlane.f32.xlu0 %v552
    %v554 = vpop.xlane.xlu0 %553
    %v555 = vsub.f32 %v552, %v554
    %v556 = vmul.f32 %v555, 1.442695
    %v557 = vpow.pop %v556
    %558 = vadd.xlane.f32.xlu0 %v557
    %v559 = vpop.xlane.xlu0 %558
    %v560 = vrcp.pop %v559
    %v561 = vmul.f32 %v557, %v560
    %562 = vst [vmem:[#allocation2] sm:$0xff] %v561
    // Predicated region
    $region38: #{mlp_forward.1} parent=1 // pred_check
      _
    $region39: #{mlp_forward.1} parent=1 // pred_check_branch
      %564 = sbr.rel (0) target = $region41
    $region40: #{mlp_forward.1} parent=1 // pred_region
      %s566 = ssub.s32 128, 128
      %567 = vsyncadd [#allocation3], %s566
      %s569 = sshll.u32 [#allocation2], 4
      %s570 = int_to_ptr.vmem [resolvable:$true] %s569
      %572 = dma.vmem_to_hbm [thread:$0]  %s570, 128, %s9, [#allocation3]
    $region41: #{mlp_forward.1} parent=1 // pred_fallthru
      _
    // Predicated region
    $region42: #{mlp_forward.1} parent=1 // pred_check
      _
    $region43: #{mlp_forward.1} parent=1 // pred_check_branch
      %574 = sbr.rel (0) target = $region45
    $region44: #{mlp_forward.1} parent=1 // pred_region
      %575 = dma.done [#allocation3], 128
    $region45: #{mlp_forward.1} parent=1 // pred_fallthru
      _
    %576 = vsyncpa [#allocation3], 1

</llo_original>
